<compile_context>
chip_gen: v5e
topology: v5e:2x2
jax: 0.10.0
libtpu: 0.0.40
codegen_flags: <defaults>
</compile_context>

<pallas_src>
import functools

import jax
import jax.numpy as jnp
from jax.experimental import pallas as pl
from jax.experimental.pallas import tpu as pltpu


def _round_up(x: int, m: int) -> int:
    return ((x + m - 1) // m) * m


def _simple_mse_loss_kernel(v1_ref, v2_ref, n2_ref, tgt_ref, out_ref, *,
                            block_n, n_valid, m_valid, need_mask):
    i = pl.program_id(0)

    v1 = v1_ref[...]                          # (block_n, D)   input dtype (f32 or bf16)
    v2 = v2_ref[...]                          # (M_pad,  D)    input dtype, VMEM-resident
    n2 = n2_ref[...]                          # (1, M_pad)     f32, VMEM-resident
    tgt = tgt_ref[...].astype(jnp.float32)    # (block_n, M_pad)

    # gram[i, j] = v1_i . v2_j  -- contraction on the last dim of both operands,
    # so Mosaic feeds the MXU its native transposed-RHS form (no v2.T tile).
    gram = jax.lax.dot_general(
        v1, v2,
        dimension_numbers=(((1,), (1,)), ((), ())),
        preferred_element_type=jnp.float32)                    # (block_n, M_pad) f32

    v1f = v1.astype(jnp.float32)
    n1 = jnp.sum(v1f * v1f, axis=-1, keepdims=True)            # (block_n, 1) f32

    # ||a - b||^2 = ||a||^2 + ||b||^2 - 2 a.b   (floored against cancellation)
    d2 = jnp.maximum(n1 + n2 - 2.0 * gram, 0.0)
    pred = jnp.exp(-jnp.sqrt(d2))                              # 'euc' similarity

    diff = pred - tgt
    if need_mask:
        row = i * block_n + jax.lax.broadcasted_iota(jnp.int32, diff.shape, 0)
        col = jax.lax.broadcasted_iota(jnp.int32, diff.shape, 1)
        diff = jnp.where((row < n_valid) & (col < m_valid), diff, 0.0)

    partial = jnp.sum(diff * diff)                             # f32 scalar
    # lane-dense partial-sum block; wrapper reads lane 0 of each grid row.
    out_ref[...] = jnp.broadcast_to(partial, out_ref.shape).astype(jnp.float32)


def simple_mse_loss(traj_vecs1, traj_vecs2, target_dist, *, block_n=128):
    """Pallas implementation of SimpleMSELoss(emb_sim_metric='euc').forward.

    NOTE: for toy shapes (~8x16x32) the custom-call launch overhead dominates and
    plain XLA matches this kernel; it pays off at large N, M, D.
    """
    N, D = traj_vecs1.shape
    M, D2 = traj_vecs2.shape
    assert D == D2
    assert target_dist.shape == (N, M)

    # Tile sizes: N-tile sublane-aligned (f32 -> 8), M padded to 128 lanes.
    tn = min(block_n, _round_up(N, 8))
    n_pad = _round_up(N, tn)
    m_pad = _round_up(M, 128)
    grid_n = n_pad // tn
    need_mask = (n_pad != N) or (m_pad != M)

    v1 = jnp.pad(traj_vecs1, ((0, n_pad - N), (0, 0)))
    v2 = jnp.pad(traj_vecs2, ((0, m_pad - M), (0, 0)))
    tgt = jnp.pad(target_dist.astype(jnp.float32),
                  ((0, n_pad - N), (0, m_pad - M)))
    # ||v2||^2 precomputed once, laid out (1, M_pad): no in-kernel transpose.
    v2f = v2.astype(jnp.float32)
    n2 = jnp.sum(v2f * v2f, axis=-1)[None, :]

    kernel = functools.partial(
        _simple_mse_loss_kernel,
        block_n=tn, n_valid=N, m_valid=M, need_mask=need_mask)

    partials = pl.pallas_call(
        kernel,
        out_shape=jax.ShapeDtypeStruct((grid_n, 1, 128), jnp.float32),
        grid_spec=pltpu.PrefetchScalarGridSpec(
            num_scalar_prefetch=0,
            grid=(grid_n,),
            in_specs=[
                pl.BlockSpec((tn, D), lambda i: (i, 0)),      # v1 tile, streamed
                pl.BlockSpec((m_pad, D), lambda i: (0, 0)),   # v2, resident (DMA'd once)
                pl.BlockSpec((1, m_pad), lambda i: (0, 0)),   # ||v2||^2, resident
                pl.BlockSpec((tn, m_pad), lambda i: (i, 0)),  # target tile, streamed
            ],
            out_specs=pl.BlockSpec((1, 1, 128), lambda i: (i, 0, 0)),
        ),
        compiler_params=pltpu.CompilerParams(
            # Independent tiles + per-tile outputs -> v7x can shard the N axis
            # across both TensorCores; no effect on single-TC v5e/v6e.
            dimension_semantics=("parallel",),
        ),
        cost_estimate=pl.CostEstimate(
            flops=2 * n_pad * m_pad * D,
            transcendentals=2 * n_pad * m_pad,   # exp + sqrt per output element
            bytes_accessed=4 * (n_pad * D + m_pad * D + n_pad * m_pad + grid_n * 128),
        ),
    )(v1, v2, n2, tgt)

    # Tiny final reduction over the per-tile partial sums (lane-duplicated).
    return jnp.sum(partials[:, 0, 0]) / jnp.float32(N * M)


def _reference(traj_vecs1, traj_vecs2, target_dist):
    # Pure-JAX reference (direct-difference formulation) for sanity checking.
    d = jnp.sqrt(jnp.maximum(
        jnp.sum((traj_vecs1[:, None, :].astype(jnp.float32)
                 - traj_vecs2[None, :, :].astype(jnp.float32)) ** 2, axis=-1), 0.0))
    pred = jnp.exp(-d)
    return jnp.mean((pred - target_dist.astype(jnp.float32)) ** 2)


if __name__ == "__main__":
    key = jax.random.PRNGKey(0)
    loss_fn = jax.jit(simple_mse_loss)

    # Case 1: non-aligned, multi-tile shapes -> exercises grid, padding, masking.
    k1, k2, k3 = jax.random.split(key, 3)
    N, M, D = 200, 150, 64
    v1 = jax.random.normal(k1, (N, D), dtype=jnp.float32)
    v2 = jax.random.normal(k2, (M, D), dtype=jnp.float32)
    tgt = jax.random.uniform(k3, (N, M), dtype=jnp.float32)  # targets in [0,1]

    loss = loss_fn(v1, v2, tgt)
    jax.block_until_ready(loss)
    ref = _reference(v1, v2, tgt)
    assert jnp.allclose(loss, ref, rtol=1e-5, atol=1e-6), (loss, ref)

    # Case 2: original toy shapes -> single-tile path.
    k4, k5, k6 = jax.random.split(jax.random.PRNGKey(0), 3)
    n2_, m2_, d2_ = 8, 16, 32
    v1s = jax.random.normal(k4, (n2_, d2_), dtype=jnp.float32)
    v2s = jax.random.normal(k5, (m2_, d2_), dtype=jnp.float32)
    tgts = jax.random.uniform(k6, (n2_, m2_), dtype=jnp.float32)

    loss_s = loss_fn(v1s, v2s, tgts)
    jax.block_until_ready(loss_s)
    ref_s = _reference(v1s, v2s, tgts)
    assert jnp.allclose(loss_s, ref_s, rtol=1e-5, atol=1e-6), (loss_s, ref_s)

    print("KERNEL_OK")
</pallas_src>

<mosaic_0001>
module attributes {stable_mosaic.version = 11 : i64} {
  func.func @_simple_mse_loss_kernel(%arg0: i32, %arg1: memref<128x64xf32, #tpu.memory_space<vmem>>, %arg2: memref<256x64xf32, #tpu.memory_space<vmem>>, %arg3: memref<1x256xf32, #tpu.memory_space<vmem>>, %arg4: memref<128x256xf32, #tpu.memory_space<vmem>>, %arg5: memref<1x1x128xf32, #tpu.memory_space<vmem>>) attributes {dimension_semantics = [#tpu.dimension_semantics<parallel>], iteration_bounds = array<i64: 2>, scalar_prefetch = 0 : i64, scratch_operands = 0 : i64, tpu.core_type = #tpu.core_type<tc>, window_params = [{transform_indices = @transform_0, window_bounds = array<i64: 128, 64>}, {pipeline_mode = #tpu.pipeline_mode<synchronous>, transform_indices = @transform_1, window_bounds = array<i64: 256, 64>}, {pipeline_mode = #tpu.pipeline_mode<synchronous>, transform_indices = @transform_2, window_bounds = array<i64: 1, 256>}, {transform_indices = @transform_3, window_bounds = array<i64: 128, 256>}, {transform_indices = @transform_4, window_bounds = array<i64: 1, 1, 128>}]} {
    %c0 = arith.constant 0 : index
    %c0_0 = arith.constant 0 : index
    %0 = vector.load %arg1[%c0, %c0_0] : memref<128x64xf32, #tpu.memory_space<vmem>>, vector<128x64xf32>
    %c0_1 = arith.constant 0 : index
    %c0_2 = arith.constant 0 : index
    %1 = vector.load %arg2[%c0_1, %c0_2] : memref<256x64xf32, #tpu.memory_space<vmem>>, vector<256x64xf32>
    %c0_3 = arith.constant 0 : index
    %c0_4 = arith.constant 0 : index
    %2 = vector.load %arg3[%c0_3, %c0_4] : memref<1x256xf32, #tpu.memory_space<vmem>>, vector<1x256xf32>
    %c0_5 = arith.constant 0 : index
    %c0_6 = arith.constant 0 : index
    %3 = vector.load %arg4[%c0_5, %c0_6] : memref<128x256xf32, #tpu.memory_space<vmem>>, vector<128x256xf32>
    %cst = arith.constant dense<0.000000e+00> : vector<128x256xf32>
    %4 = tpu.matmul %0, %1, %cst {dimension_numbers = #tpu.dot_dimension_numbers<[1], [1], [0], [0], [0, 0, 1, 0], [], []>} : vector<128x64xf32>, vector<256x64xf32>, vector<128x256xf32> -> vector<128x256xf32>
    %5 = arith.mulf %0, %0 : vector<128x64xf32>
    %cst_7 = arith.constant dense<0.000000e+00> : vector<128xf32>
    %6 = vector.multi_reduction <add>, %5, %cst_7 [1] : vector<128x64xf32> to vector<128xf32>
    %7 = vector.shape_cast %6 : vector<128xf32> to vector<128x1xf32>
    %8 = vector.broadcast %7 : vector<128x1xf32> to vector<128x256xf32>
    %9 = vector.broadcast %2 : vector<1x256xf32> to vector<128x256xf32>
    %10 = arith.addf %8, %9 : vector<128x256xf32>
    %cst_8 = arith.constant 2.000000e+00 : f32
    %11 = vector.broadcast %cst_8 : f32 to vector<128x256xf32>
    %12 = arith.mulf %11, %4 : vector<128x256xf32>
    %13 = arith.subf %10, %12 : vector<128x256xf32>
    %cst_9 = arith.constant 0.000000e+00 : f32
    %14 = vector.broadcast %cst_9 : f32 to vector<128x256xf32>
    %15 = arith.maximumf %13, %14 : vector<128x256xf32>
    %16 = math.sqrt %15 : vector<128x256xf32>
    %cst_10 = arith.constant 0.000000e+00 : f32
    %17 = vector.broadcast %cst_10 : f32 to vector<128x256xf32>
    %18 = arith.subf %17, %16 : vector<128x256xf32>
    %19 = math.exp %18 : vector<128x256xf32>
    %20 = arith.subf %19, %3 : vector<128x256xf32>
    %c128_i32 = arith.constant 128 : i32
    %21 = arith.muli %arg0, %c128_i32 : i32
    %22 = tpu.iota {dimensions = array<i32: 0>} : vector<128x256xi32>
    %23 = vector.broadcast %21 : i32 to vector<128x256xi32>
    %24 = arith.addi %23, %22 : vector<128x256xi32>
    %25 = tpu.iota {dimensions = array<i32: 1>} : vector<128x256xi32>
    %c200_i32 = arith.constant 200 : i32
    %26 = vector.broadcast %c200_i32 : i32 to vector<128x256xi32>
    %27 = arith.cmpi slt, %24, %26 : vector<128x256xi32>
    %c150_i32 = arith.constant 150 : i32
    %28 = vector.broadcast %c150_i32 : i32 to vector<128x256xi32>
    %29 = arith.cmpi slt, %25, %28 : vector<128x256xi32>
    %30 = arith.andi %27, %29 : vector<128x256xi1>
    %cst_11 = arith.constant 0.000000e+00 : f32
    %31 = vector.broadcast %cst_11 : f32 to vector<128x256xf32>
    %32 = arith.select %30, %20, %31 : vector<128x256xi1>, vector<128x256xf32>
    %33 = arith.mulf %32, %32 : vector<128x256xf32>
    %34 = vector.shape_cast %33 : vector<128x256xf32> to vector<1x128x256xf32>
    %cst_12 = arith.constant dense<0.000000e+00> : vector<1xf32>
    %35 = vector.multi_reduction <add>, %34, %cst_12 [1, 2] : vector<1x128x256xf32> to vector<1xf32>
    %36 = vector.shape_cast %35 : vector<1xf32> to vector<1x1x1xf32>
    %37 = vector.extract %36[0, 0, 0] : f32 from vector<1x1x1xf32>
    %38 = vector.broadcast %37 : f32 to vector<1x1x128xf32>
    %c0_13 = arith.constant 0 : index
    %c0_14 = arith.constant 0 : index
    %c0_15 = arith.constant 0 : index
    %39 = vector.load %arg5[%c0_13, %c0_14, %c0_15] : memref<1x1x128xf32, #tpu.memory_space<vmem>>, vector<1x1x128xf32>
    tpu.vector_store %arg5[%c0_13, %c0_14, %c0_15], %38 {strides = array<i32>} : memref<1x1x128xf32, #tpu.memory_space<vmem>>, vector<1x1x128xf32>,
    return
  }
  func.func @transform_0(%arg0: i32) -> (i32, i32) {
    %c0_i32 = arith.constant 0 : i32
    %c0_i32_0 = arith.constant 0 : i32
    return %arg0, %c0_i32 : i32, i32
  }
  func.func @transform_1(%arg0: i32) -> (i32, i32) {
    %c0_i32 = arith.constant 0 : i32
    %c0_i32_0 = arith.constant 0 : i32
    %c0_i32_1 = arith.constant 0 : i32
    return %c0_i32, %c0_i32_0 : i32, i32
  }
  func.func @transform_2(%arg0: i32) -> (i32, i32) {
    %c0_i32 = arith.constant 0 : i32
    %c0_i32_0 = arith.constant 0 : i32
    %c0_i32_1 = arith.constant 0 : i32
    return %c0_i32, %c0_i32_0 : i32, i32
  }
  func.func @transform_3(%arg0: i32) -> (i32, i32) {
    %c0_i32 = arith.constant 0 : i32
    %c0_i32_0 = arith.constant 0 : i32
    return %arg0, %c0_i32 : i32, i32
  }
  func.func @transform_4(%arg0: i32) -> (i32, i32, i32) {
    %c0_i32 = arith.constant 0 : i32
    %c0_i32_0 = arith.constant 0 : i32
    %c0_i32_1 = arith.constant 0 : i32
    return %arg0, %c0_i32, %c0_i32_0 : i32, i32, i32
  }
}

</mosaic_0001>

<llo_original>
// kernel: simple_mse_loss.1
$region0: #{simple_mse_loss.1}
  #allocation0 [shape = 'u32[]', space=smem, size = 0x4, offset = 0x4, fixed_abs, tag = 'smem constant byte address 0x4 - core index']
  #allocation1 [shape = 'u32[72,128]{1,0:T(1,128)}', space=vmem, size = 0x9000, scoped, tag = 'internal scratch']
  %s0 = inlined_call_operand.vmem [shape: f32[256,64], index: 0, kind: input, shape index: {}]
  %s1 = inlined_call_operand.vmem [shape: f32[256,64], index: 1, kind: input, shape index: {}]
  %s2 = inlined_call_operand.vmem [shape: f32[1,256], index: 2, kind: input, shape index: {}]
  %s3 = inlined_call_operand.vmem [shape: f32[256,256], index: 3, kind: input, shape index: {}]
  %s4 = inlined_call_operand.vmem [shape: f32[2,1,128], index: 4, kind: output, shape index: {}]
  %s5 = sld [smem:[#allocation0]]
  $region49: #{simple_mse_loss.1} parent=0
    _
  %s7 = ssub.s32 1, %s5
  %s8 = scalar_select 0, %s7, %s5
  loop: start=0, step=1, limit=4
  $region2: #{simple_mse_loss.1} parent=0 // loop_pre_header
    _
  $region3: #{simple_mse_loss.1} parent=0 // loop_header
    %s10 = sphi 0, %s14
    %p11 = scmp.ge.s32.totalorder %s10, 4
    %s20 = sphi 0, %s22
    %s23 = sphi 0, %s20
    %s24 = sphi 0, %s23
    %s40 = sphi 0, %s24
    %s44 = sphi 0, %s44
    %s46 = sphi 0, %s44
    %s47 = sphi 0, %s46
    %s61 = sphi 0, %s47
    %s65 = sphi 0, %s65
    %s67 = sphi 0, %s65
    %s68 = sphi 0, %s67
    %s82 = sphi 0, %s68
    %s88 = sphi 0, %s90
    %s91 = sphi 0, %s88
    %s92 = sphi 0, %s91
    %s108 = sphi 0, %s92
    %s114 = sphi 0, %s116
    %s117 = sphi 0, %s114
    %s118 = sphi 0, %s117
    %s134 = sphi 0, %s118
  $region4: #{simple_mse_loss.1} parent=0 // loop_header_branch
    %13 = sbr.rel (%p11) target = $region8
  $region5: #{simple_mse_loss.1} parent=0 // loop_body
    %s15 = ssub.s32 %s10, 1
    %s16 = ssub.s32 %s10, 2
    %s17 = sadd.s32 %s10, 1
    %s18 = ssub.s32 %s10, %s17
    %p19 = scmp.eq.s32.totalorder %s18, 0
    %s21 = sadd.s32 %s20, 1
    %s22 = scalar_select %p19, %s20, %s21
    %p25 = pneg %p19
    %p26 = scmp.eq.s32.totalorder %s10, 1
    %p27 = por %p25, %p26
    %p28 = scmp.ne.s32.totalorder %s20, %s23
    %p29 = scmp.eq.s32.totalorder %s10, 0
    %p30 = por %p28, %p29
    %p31 = scmp.ne.s32.totalorder %s20, %s23
    %p32 = scmp.eq.s32.totalorder %s15, 1
    %p33 = por %p31, %p32
    %p34 = scmp.ne.s32.totalorder %s23, %s24
    %p35 = scmp.eq.s32.totalorder %s15, 0
    %p36 = por %p34, %p35
    %p37 = scmp.ne.s32.totalorder %s23, %s24
    %p38 = scmp.eq.s32.totalorder %s16, 1
    %p39 = por %p37, %p38
    %p41 = scmp.ne.s32.totalorder %s24, %s40
    %p42 = scmp.eq.s32.totalorder %s16, 0
    %p43 = por %p41, %p42
    %s45 = sadd.s32 %s44, 1
    %p48 = scmp.eq.s32.totalorder %s10, 1
    %p49 = scmp.ne.s32.totalorder %s44, %s46
    %p50 = scmp.eq.s32.totalorder %s10, 0
    %p51 = por %p49, %p50
    %p52 = scmp.ne.s32.totalorder %s44, %s46
    %p53 = scmp.eq.s32.totalorder %s15, 1
    %p54 = por %p52, %p53
    %p55 = scmp.ne.s32.totalorder %s46, %s47
    %p56 = scmp.eq.s32.totalorder %s15, 0
    %p57 = por %p55, %p56
    %p58 = scmp.ne.s32.totalorder %s46, %s47
    %p59 = scmp.eq.s32.totalorder %s16, 1
    %p60 = por %p58, %p59
    %p62 = scmp.ne.s32.totalorder %s47, %s61
    %p63 = scmp.eq.s32.totalorder %s16, 0
    %p64 = por %p62, %p63
    %s66 = sadd.s32 %s65, 1
    %p69 = scmp.eq.s32.totalorder %s10, 1
    %p70 = scmp.ne.s32.totalorder %s65, %s67
    %p71 = scmp.eq.s32.totalorder %s10, 0
    %p72 = por %p70, %p71
    %p73 = scmp.ne.s32.totalorder %s65, %s67
    %p74 = scmp.eq.s32.totalorder %s15, 1
    %p75 = por %p73, %p74
    %p76 = scmp.ne.s32.totalorder %s67, %s68
    %p77 = scmp.eq.s32.totalorder %s15, 0
    %p78 = por %p76, %p77
    %p79 = scmp.ne.s32.totalorder %s67, %s68
    %p80 = scmp.eq.s32.totalorder %s16, 1
    %p81 = por %p79, %p80
    %p83 = scmp.ne.s32.totalorder %s68, %s82
    %p84 = scmp.eq.s32.totalorder %s16, 0
    %p85 = por %p83, %p84
    %s86 = ssub.s32 %s10, %s17
    %p87 = scmp.eq.s32.totalorder %s86, 0
    %s89 = sadd.s32 %s88, 1
    %s90 = scalar_select %p87, %s88, %s89
    %p93 = pneg %p87
    %p94 = scmp.eq.s32.totalorder %s10, 1
    %p95 = por %p93, %p94
    %p96 = scmp.ne.s32.totalorder %s88, %s91
    %p97 = scmp.eq.s32.totalorder %s10, 0
    %p98 = por %p96, %p97
    %p99 = scmp.ne.s32.totalorder %s88, %s91
    %p100 = scmp.eq.s32.totalorder %s15, 1
    %p101 = por %p99, %p100
    %p102 = scmp.ne.s32.totalorder %s91, %s92
    %p103 = scmp.eq.s32.totalorder %s15, 0
    %p104 = por %p102, %p103
    %p105 = scmp.ne.s32.totalorder %s91, %s92
    %p106 = scmp.eq.s32.totalorder %s16, 1
    %p107 = por %p105, %p106
    %p109 = scmp.ne.s32.totalorder %s92, %s108
    %p110 = scmp.eq.s32.totalorder %s16, 0
    %p111 = por %p109, %p110
    %s112 = ssub.s32 %s10, %s17
    %p113 = scmp.eq.s32.totalorder %s112, 0
    %s115 = sadd.s32 %s114, 1
    %s116 = scalar_select %p113, %s114, %s115
    %p119 = pneg %p113
    %p120 = scmp.eq.s32.totalorder %s10, 1
    %p121 = por %p119, %p120
    %p122 = scmp.ne.s32.totalorder %s114, %s117
    %p123 = scmp.eq.s32.totalorder %s10, 0
    %p124 = por %p122, %p123
    %p125 = scmp.ne.s32.totalorder %s114, %s117
    %p126 = scmp.eq.s32.totalorder %s15, 1
    %p127 = por %p125, %p126
    %p128 = scmp.ne.s32.totalorder %s117, %s118
    %p129 = scmp.eq.s32.totalorder %s15, 0
    %p130 = por %p128, %p129
    %p131 = scmp.ne.s32.totalorder %s117, %s118
    %p132 = scmp.eq.s32.totalorder %s16, 1
    %p133 = por %p131, %p132
    %p135 = scmp.ne.s32.totalorder %s118, %s134
    %p136 = scmp.eq.s32.totalorder %s16, 0
    %p137 = por %p135, %p136
    %p138 = scmp.le.s32.totalorder 1, %s10
    %p139 = scmp.lt.s32.totalorder %s10, 3
    %p140 = pnand %p138, %p139
    %p141 = pneg %p140
    // Predicated region
    $region9: #{simple_mse_loss.1} parent=5 // pred_check
      _
    $region10: #{simple_mse_loss.1} parent=5 // pred_check_branch
      %143 = sbr.rel (%p140) target = $region12
    $region11: #{simple_mse_loss.1} parent=5 // pred_region
      %s144 = ssub.s32 %s10, 1
      // Predicated region
      $region13: #{simple_mse_loss.1} parent=11 // pred_check
        %p145 = pneg %p57
      $region14: #{simple_mse_loss.1} parent=11 // pred_check_branch
        %147 = sbr.rel (%p145) target = $region16
      $region15: #{simple_mse_loss.1} parent=11 // pred_region
        _
      $region16: #{simple_mse_loss.1} parent=11 // pred_fallthru
        _
      // Predicated region
      $region17: #{simple_mse_loss.1} parent=11 // pred_check
        %p148 = pneg %p78
      $region18: #{simple_mse_loss.1} parent=11 // pred_check_branch
        %150 = sbr.rel (%p148) target = $region20
      $region19: #{simple_mse_loss.1} parent=11 // pred_region
        _
      $region20: #{simple_mse_loss.1} parent=11 // pred_fallthru
        _
    $region12: #{simple_mse_loss.1} parent=5 // pred_fallthru
      _
    %p151 = scmp.lt.s32.totalorder %s10, 2
    // Predicated region
    $region21: #{simple_mse_loss.1} parent=5 // pred_check
      %p152 = pneg %p151
    $region22: #{simple_mse_loss.1} parent=5 // pred_check_branch
      %154 = sbr.rel (%p152) target = $region24
    $region23: #{simple_mse_loss.1} parent=5 // pred_region
      // Predicated region
      $region25: #{simple_mse_loss.1} parent=23 // pred_check
        %p155 = pneg %p30
      $region26: #{simple_mse_loss.1} parent=23 // pred_check_branch
        %157 = sbr.rel (%p155) target = $region28
      $region27: #{simple_mse_loss.1} parent=23 // pred_region
        %s158 = smul.u32 16, %s10
        %p159 = scmp.lt.s32.totalorder %s158, 31
        %s160 = scalar_select %p159, %s158, 31
        %s161 = smul.addr %s160, 8
        %s162 = scalar_lea.vmem %s0, %s161
        %s163 = smul.u32 16, %s10
      $region28: #{simple_mse_loss.1} parent=23 // pred_fallthru
        _
      // Predicated region
      $region29: #{simple_mse_loss.1} parent=23 // pred_check
        %p164 = pneg %p98
      $region30: #{simple_mse_loss.1} parent=23 // pred_check_branch
        %166 = sbr.rel (%p164) target = $region32
      $region31: #{simple_mse_loss.1} parent=23 // pred_region
        %s167 = smul.u32 16, %s10
        %p168 = scmp.lt.s32.totalorder %s167, 31
        %s169 = scalar_select %p168, %s167, 31
        %s170 = smul.addr %s169, 2
        %s171 = smul.addr %s170, 8
        %s172 = scalar_lea.vmem %s3, %s171
        %s173 = smul.u32 16, %s10
      $region32: #{simple_mse_loss.1} parent=23 // pred_fallthru
        _
    $region24: #{simple_mse_loss.1} parent=5 // pred_fallthru
      _
    %p174 = scmp.le.s32.totalorder 1, %s10
    %p175 = scmp.lt.s32.totalorder %s10, 3
    %p176 = pnand %p174, %p175
    %p177 = pneg %p176
    // Predicated region
    $region33: #{simple_mse_loss.1} parent=5 // pred_check
      _
    $region34: #{simple_mse_loss.1} parent=5 // pred_check_branch
      %179 = sbr.rel (%p176) target = $region36
    $region35: #{simple_mse_loss.1} parent=5 // pred_region
      %s180 = ssub.s32 %s10, 1
      %s181 = smul.u32 16, %s15
      %p182 = scmp.lt.s32.totalorder %s181, 31
      %s183 = scalar_select %p182, %s181, 31
      %s184 = smul.addr %s183, 8
      %s185 = scalar_lea.vmem %s0, %s184
      %p186 = pneg %p36
      %p187 = pneg %p33
      %p188 = pneg %p57
      %p189 = pneg %p54
      %p190 = pneg %p78
      %p191 = pneg %p75
      %s192 = smul.u32 16, %s15
      %p193 = scmp.lt.s32.totalorder %s192, 31
      %s194 = scalar_select %p193, %s192, 31
      %s195 = smul.addr %s194, 2
      %s196 = smul.addr %s195, 8
      %s197 = scalar_lea.vmem %s3, %s196
      %p198 = pneg %p104
      %p199 = pneg %p101
      %p200 = pneg %p130
      %p201 = pneg %p127
      %p202 = scmp.lt.s32.totalorder %s15, 1
      %s203 = scalar_select %p202, %s15, 1
      %s204 = scalar_lea.vmem %s4, %s203
      %s205 = smul.u32 16, %s15
      %p206 = scmp.lt.s32.totalorder %s205, 31
      %s207 = scalar_select %p206, %s205, 31
      %s208 = smul.addr %s207, 8
      %s209 = scalar_lea.vmem %s0, %s208
      %s210 = smul.u32 16, %s15
      %s211 = smul.u32 16, %s15
      %p212 = scmp.lt.s32.totalorder %s211, 31
      %s213 = scalar_select %p212, %s211, 31
      %s214 = smul.addr %s213, 2
      %s215 = smul.addr %s214, 8
      %s216 = scalar_lea.vmem %s3, %s215
      %s217 = smul.u32 16, %s15
      %p218 = scmp.lt.s32.totalorder %s15, 1
      %s219 = scalar_select %p218, %s15, 1
      %s220 = scalar_lea.vmem %s4, %s219
      %v221 = vld [vmem:[%s209] sm:$0xff]
      %v222 = vld [vmem:[%s209 + $0x8] sm:$0xff]
      %v223 = vld [vmem:[%s209 + $0x10] sm:$0xff]
      %v224 = vld [vmem:[%s209 + $0x18] sm:$0xff]
      %v225 = vld [vmem:[%s209 + $0x20] sm:$0xff]
      %v226 = vld [vmem:[%s209 + $0x28] sm:$0xff]
      %v227 = vld [vmem:[%s209 + $0x30] sm:$0xff]
      %v228 = vld [vmem:[%s209 + $0x38] sm:$0xff]
      %v229 = vld [vmem:[%s209 + $0x40] sm:$0xff]
      %v230 = vld [vmem:[%s209 + $0x48] sm:$0xff]
      %v231 = vld [vmem:[%s209 + $0x50] sm:$0xff]
      %v232 = vld [vmem:[%s209 + $0x58] sm:$0xff]
      %v233 = vld [vmem:[%s209 + $0x60] sm:$0xff]
      %v234 = vld [vmem:[%s209 + $0x68] sm:$0xff]
      %v235 = vld [vmem:[%s209 + $0x70] sm:$0xff]
      %v236 = vld [vmem:[%s209 + $0x78] sm:$0xff]
      %v237 = vld [vmem:[%s1] sm:$0xff]
      %v238 = vld [vmem:[%s1 + $0x8] sm:$0xff]
      %v239 = vld [vmem:[%s1 + $0x10] sm:$0xff]
      %v240 = vld [vmem:[%s1 + $0x18] sm:$0xff]
      %v241 = vld [vmem:[%s1 + $0x20] sm:$0xff]
      %v242 = vld [vmem:[%s1 + $0x28] sm:$0xff]
      %v243 = vld [vmem:[%s1 + $0x30] sm:$0xff]
      %v244 = vld [vmem:[%s1 + $0x38] sm:$0xff]
      %v245 = vld [vmem:[%s1 + $0x40] sm:$0xff]
      %v246 = vld [vmem:[%s1 + $0x48] sm:$0xff]
      %v247 = vld [vmem:[%s1 + $0x50] sm:$0xff]
      %v248 = vld [vmem:[%s1 + $0x58] sm:$0xff]
      %v249 = vld [vmem:[%s1 + $0x60] sm:$0xff]
      %v250 = vld [vmem:[%s1 + $0x68] sm:$0xff]
      %v251 = vld [vmem:[%s1 + $0x70] sm:$0xff]
      %v252 = vld [vmem:[%s1 + $0x78] sm:$0xff]
      %v253 = vld [vmem:[%s1 + $0x80] sm:$0xff]
      %v254 = vld [vmem:[%s1 + $0x88] sm:$0xff]
      %v255 = vld [vmem:[%s1 + $0x90] sm:$0xff]
      %v256 = vld [vmem:[%s1 + $0x98] sm:$0xff]
      %v257 = vld [vmem:[%s1 + $0xa0] sm:$0xff]
      %v258 = vld [vmem:[%s1 + $0xa8] sm:$0xff]
      %v259 = vld [vmem:[%s1 + $0xb0] sm:$0xff]
      %v260 = vld [vmem:[%s1 + $0xb8] sm:$0xff]
      %v261 = vld [vmem:[%s1 + $0xc0] sm:$0xff]
      %v262 = vld [vmem:[%s1 + $0xc8] sm:$0xff]
      %v263 = vld [vmem:[%s1 + $0xd0] sm:$0xff]
      %v264 = vld [vmem:[%s1 + $0xd8] sm:$0xff]
      %v265 = vld [vmem:[%s1 + $0xe0] sm:$0xff]
      %v266 = vld [vmem:[%s1 + $0xe8] sm:$0xff]
      %v267 = vld [vmem:[%s1 + $0xf0] sm:$0xff]
      %v268 = vld [vmem:[%s1 + $0xf8] sm:$0xff]
      %v269 = vld [vmem:[%s2] sm:$0x3]
      %v270 = vld [vmem:[%s216] sm:$0xff]
      %v271 = vld [vmem:[%s216 + $0x8] sm:$0xff]
      %v272 = vld [vmem:[%s216 + $0x10] sm:$0xff]
      %v273 = vld [vmem:[%s216 + $0x18] sm:$0xff]
      %v274 = vld [vmem:[%s216 + $0x20] sm:$0xff]
      %v275 = vld [vmem:[%s216 + $0x28] sm:$0xff]
      %v276 = vld [vmem:[%s216 + $0x30] sm:$0xff]
      %v277 = vld [vmem:[%s216 + $0x38] sm:$0xff]
      %v278 = vld [vmem:[%s216 + $0x40] sm:$0xff]
      %v279 = vld [vmem:[%s216 + $0x48] sm:$0xff]
      %v280 = vld [vmem:[%s216 + $0x50] sm:$0xff]
      %v281 = vld [vmem:[%s216 + $0x58] sm:$0xff]
      %v282 = vld [vmem:[%s216 + $0x60] sm:$0xff]
      %v283 = vld [vmem:[%s216 + $0x68] sm:$0xff]
      %v284 = vld [vmem:[%s216 + $0x70] sm:$0xff]
      %v285 = vld [vmem:[%s216 + $0x78] sm:$0xff]
      %v286 = vld [vmem:[%s216 + $0x80] sm:$0xff]
      %v287 = vld [vmem:[%s216 + $0x88] sm:$0xff]
      %v288 = vld [vmem:[%s216 + $0x90] sm:$0xff]
      %v289 = vld [vmem:[%s216 + $0x98] sm:$0xff]
      %v290 = vld [vmem:[%s216 + $0xa0] sm:$0xff]
      %v291 = vld [vmem:[%s216 + $0xa8] sm:$0xff]
      %v292 = vld [vmem:[%s216 + $0xb0] sm:$0xff]
      %v293 = vld [vmem:[%s216 + $0xb8] sm:$0xff]
      %v294 = vld [vmem:[%s216 + $0xc0] sm:$0xff]
      %v295 = vld [vmem:[%s216 + $0xc8] sm:$0xff]
      %v296 = vld [vmem:[%s216 + $0xd0] sm:$0xff]
      %v297 = vld [vmem:[%s216 + $0xd8] sm:$0xff]
      %v298 = vld [vmem:[%s216 + $0xe0] sm:$0xff]
      %v299 = vld [vmem:[%s216 + $0xe8] sm:$0xff]
      %v300 = vld [vmem:[%s216 + $0xf0] sm:$0xff]
      %v301 = vld [vmem:[%s216 + $0xf8] sm:$0xff]
      %vm302 = vcmask 523264
      %v304 = vsel %vm302, %v221, 0
      %v307 = vsel %vm302, %v222, 0
      %v310 = vsel %vm302, %v223, 0
      %v313 = vsel %vm302, %v224, 0
      %v316 = vsel %vm302, %v225, 0
      %v319 = vsel %vm302, %v226, 0
      %v322 = vsel %vm302, %v227, 0
      %v325 = vsel %vm302, %v228, 0
      %v328 = vsel %vm302, %v229, 0
      %v331 = vsel %vm302, %v230, 0
      %v334 = vsel %vm302, %v231, 0
      %v337 = vsel %vm302, %v232, 0
      %v340 = vsel %vm302, %v233, 0
      %v343 = vsel %vm302, %v234, 0
      %v346 = vsel %vm302, %v235, 0
      %v349 = vsel %vm302, %v236, 0
      %v352 = vsel %vm302, %v237, 0
      %v355 = vsel %vm302, %v238, 0
      %v358 = vsel %vm302, %v239, 0
      %v361 = vsel %vm302, %v240, 0
      %v364 = vsel %vm302, %v241, 0
      %v367 = vsel %vm302, %v242, 0
      %v370 = vsel %vm302, %v243, 0
      %v373 = vsel %vm302, %v244, 0
      %v376 = vsel %vm302, %v245, 0
      %v379 = vsel %vm302, %v246, 0
      %v382 = vsel %vm302, %v247, 0
      %v385 = vsel %vm302, %v248, 0
      %v388 = vsel %vm302, %v249, 0
      %v391 = vsel %vm302, %v250, 0
      %v394 = vsel %vm302, %v251, 0
      %v397 = vsel %vm302, %v252, 0
      %v400 = vsel %vm302, %v253, 0
      %v403 = vsel %vm302, %v254, 0
      %v406 = vsel %vm302, %v255, 0
      %v409 = vsel %vm302, %v256, 0
      %v412 = vsel %vm302, %v257, 0
      %v415 = vsel %vm302, %v258, 0
      %v418 = vsel %vm302, %v259, 0
      %v421 = vsel %vm302, %v260, 0
      %v424 = vsel %vm302, %v261, 0
      %v427 = vsel %vm302, %v262, 0
      %v430 = vsel %vm302, %v263, 0
      %v433 = vsel %vm302, %v264, 0
      %v436 = vsel %vm302, %v265, 0
      %v439 = vsel %vm302, %v266, 0
      %v442 = vsel %vm302, %v267, 0
      %v445 = vsel %vm302, %v268, 0
      %447 = vmatpush.xpose.msra.mxu0 %v397
      %448 = vmatpush.xpose.msra.mxu0 %v394
      %449 = vmatpush.xpose.msra.mxu0 %v391
      %450 = vmatpush.xpose.msra.mxu0 %v388
      %451 = vmatpush.xpose.msra.mxu0 %v385
      %452 = vmatpush.xpose.msra.mxu0 %v382
      %453 = vmatpush.xpose.msra.mxu0 %v379
      %454 = vmatpush.xpose.msra.mxu0 %v376
      %455 = vmatpush.xpose.msra.mxu0 %v373
      %456 = vmatpush.xpose.msra.mxu0 %v370
      %457 = vmatpush.xpose.msra.mxu0 %v367
      %458 = vmatpush.xpose.msra.mxu0 %v364
      %459 = vmatpush.xpose.msra.mxu0 %v361
      %460 = vmatpush.xpose.msra.mxu0 %v358
      %461 = vmatpush.xpose.msra.mxu0 %v355
      %462 = vmatpush.xpose.msra.mxu0 %v352
      %463 = vmatmul.f32.gmra.mxu0 %v304
      %v464 = vpop.f32.mrf.mxu0
      %v465 = vadd.f32 0.0, %v464
      %466 = vmatmul.f32.gmra.mxu0 %v307
      %v467 = vpop.f32.mrf.mxu0
      %v468 = vadd.f32 0.0, %v467
      %469 = vmatmul.f32.gmra.mxu0 %v310
      %v470 = vpop.f32.mrf.mxu0
      %v471 = vadd.f32 0.0, %v470
      %472 = vmatmul.f32.gmra.mxu0 %v313
      %v473 = vpop.f32.mrf.mxu0
      %v474 = vadd.f32 0.0, %v473
      %475 = vmatmul.f32.gmra.mxu0 %v316
      %v476 = vpop.f32.mrf.mxu0
      %v477 = vadd.f32 0.0, %v476
      %478 = vmatmul.f32.gmra.mxu0 %v319
      %v479 = vpop.f32.mrf.mxu0
      %v480 = vadd.f32 0.0, %v479
      %481 = vmatmul.f32.gmra.mxu0 %v322
      %v482 = vpop.f32.mrf.mxu0
      %v483 = vadd.f32 0.0, %v482
      %484 = vmatmul.f32.gmra.mxu0 %v325
      %v485 = vpop.f32.mrf.mxu0
      %v486 = vadd.f32 0.0, %v485
      %487 = vmatmul.f32.gmra.mxu0 %v328
      %v488 = vpop.f32.mrf.mxu0
      %v489 = vadd.f32 0.0, %v488
      %490 = vmatmul.f32.gmra.mxu0 %v331
      %v491 = vpop.f32.mrf.mxu0
      %v492 = vadd.f32 0.0, %v491
      %493 = vmatmul.f32.gmra.mxu0 %v334
      %v494 = vpop.f32.mrf.mxu0
      %v495 = vadd.f32 0.0, %v494
      %496 = vmatmul.f32.gmra.mxu0 %v337
      %v497 = vpop.f32.mrf.mxu0
      %v498 = vadd.f32 0.0, %v497
      %499 = vmatmul.f32.gmra.mxu0 %v340
      %v500 = vpop.f32.mrf.mxu0
      %v501 = vadd.f32 0.0, %v500
      %502 = vmatmul.f32.gmra.mxu0 %v343
      %v503 = vpop.f32.mrf.mxu0
      %v504 = vadd.f32 0.0, %v503
      %505 = vmatmul.f32.gmra.mxu0 %v346
      %v506 = vpop.f32.mrf.mxu0
      %v507 = vadd.f32 0.0, %v506
      %508 = vmatmul.f32.gmra.mxu0 %v349
      %v509 = vpop.f32.mrf.mxu0
      %v510 = vadd.f32 0.0, %v509
      %511 = vdwg.mxu0
      %512 = vmatpush.xpose.msra.mxu0 %v445
      %513 = vmatpush.xpose.msra.mxu0 %v442
      %514 = vmatpush.xpose.msra.mxu0 %v439
      %515 = vmatpush.xpose.msra.mxu0 %v436
      %516 = vmatpush.xpose.msra.mxu0 %v433
      %517 = vmatpush.xpose.msra.mxu0 %v430
      %518 = vmatpush.xpose.msra.mxu0 %v427
      %519 = vmatpush.xpose.msra.mxu0 %v424
      %520 = vmatpush.xpose.msra.mxu0 %v421
      %521 = vmatpush.xpose.msra.mxu0 %v418
      %522 = vmatpush.xpose.msra.mxu0 %v415
      %523 = vmatpush.xpose.msra.mxu0 %v412
      %524 = vmatpush.xpose.msra.mxu0 %v409
      %525 = vmatpush.xpose.msra.mxu0 %v406
      %526 = vmatpush.xpose.msra.mxu0 %v403
      %527 = vmatpush.xpose.msra.mxu0 %v400
      %528 = vmatmul.f32.gmra.mxu0 %v304
      %v529 = vpop.f32.mrf.mxu0
      %v530 = vadd.f32 0.0, %v529
      %531 = vmatmul.f32.gmra.mxu0 %v307
      %v532 = vpop.f32.mrf.mxu0
      %v533 = vadd.f32 0.0, %v532
      %534 = vmatmul.f32.gmra.mxu0 %v310
      %v535 = vpop.f32.mrf.mxu0
      %v536 = vadd.f32 0.0, %v535
      %537 = vmatmul.f32.gmra.mxu0 %v313
      %v538 = vpop.f32.mrf.mxu0
      %v539 = vadd.f32 0.0, %v538
      %540 = vmatmul.f32.gmra.mxu0 %v316
      %v541 = vpop.f32.mrf.mxu0
      %v542 = vadd.f32 0.0, %v541
      %543 = vmatmul.f32.gmra.mxu0 %v319
      %v544 = vpop.f32.mrf.mxu0
      %v545 = vadd.f32 0.0, %v544
      %546 = vmatmul.f32.gmra.mxu0 %v322
      %v547 = vpop.f32.mrf.mxu0
      %v548 = vadd.f32 0.0, %v547
      %549 = vmatmul.f32.gmra.mxu0 %v325
      %v550 = vpop.f32.mrf.mxu0
      %v551 = vadd.f32 0.0, %v550
      %552 = vmatmul.f32.gmra.mxu0 %v328
      %v553 = vpop.f32.mrf.mxu0
      %v554 = vadd.f32 0.0, %v553
      %555 = vmatmul.f32.gmra.mxu0 %v331
      %v556 = vpop.f32.mrf.mxu0
      %v557 = vadd.f32 0.0, %v556
      %558 = vmatmul.f32.gmra.mxu0 %v334
      %v559 = vpop.f32.mrf.mxu0
      %v560 = vadd.f32 0.0, %v559
      %561 = vmatmul.f32.gmra.mxu0 %v337
      %v562 = vpop.f32.mrf.mxu0
      %v563 = vadd.f32 0.0, %v562
      %564 = vmatmul.f32.gmra.mxu0 %v340
      %v565 = vpop.f32.mrf.mxu0
      %v566 = vadd.f32 0.0, %v565
      %567 = vmatmul.f32.gmra.mxu0 %v343
      %v568 = vpop.f32.mrf.mxu0
      %v569 = vadd.f32 0.0, %v568
      %570 = vmatmul.f32.gmra.mxu0 %v346
      %v571 = vpop.f32.mrf.mxu0
      %v572 = vadd.f32 0.0, %v571
      %573 = vmatmul.f32.gmra.mxu0 %v349
      %v574 = vpop.f32.mrf.mxu0
      %v575 = vadd.f32 0.0, %v574
      %576 = vdwg.mxu0
      %v577 = vmul.f32 %v221, %v221
      %v578 = vmul.f32 %v222, %v222
      %v579 = vmul.f32 %v223, %v223
      %v580 = vmul.f32 %v224, %v224
      %v581 = vmul.f32 %v225, %v225
      %v582 = vmul.f32 %v226, %v226
      %v583 = vmul.f32 %v227, %v227
      %v584 = vmul.f32 %v228, %v228
      %v585 = vmul.f32 %v229, %v229
      %v586 = vmul.f32 %v230, %v230
      %v587 = vmul.f32 %v231, %v231
      %v588 = vmul.f32 %v232, %v232
      %v589 = vmul.f32 %v233, %v233
      %v590 = vmul.f32 %v234, %v234
      %v591 = vmul.f32 %v235, %v235
      %v592 = vmul.f32 %v236, %v236
      %v593 = vsel %vm302, %v577, 0.0
      %594 = vadd.xlane.f32.xlu0 %v593
      %v595 = vpop.xlane.xlu0 %594
      %v596 = vsel %vm302, %v578, 0.0
      %597 = vadd.xlane.f32.xlu0 %v596
      %v598 = vpop.xlane.xlu0 %597
      %v599 = vsel %vm302, %v579, 0.0
      %600 = vadd.xlane.f32.xlu0 %v599
      %v601 = vpop.xlane.xlu0 %600
      %v602 = vsel %vm302, %v580, 0.0
      %603 = vadd.xlane.f32.xlu0 %v602
      %v604 = vpop.xlane.xlu0 %603
      %v605 = vsel %vm302, %v581, 0.0
      %606 = vadd.xlane.f32.xlu0 %v605
      %v607 = vpop.xlane.xlu0 %606
      %v608 = vsel %vm302, %v582, 0.0
      %609 = vadd.xlane.f32.xlu0 %v608
      %v610 = vpop.xlane.xlu0 %609
      %v611 = vsel %vm302, %v583, 0.0
      %612 = vadd.xlane.f32.xlu0 %v611
      %v613 = vpop.xlane.xlu0 %612
      %v614 = vsel %vm302, %v584, 0.0
      %615 = vadd.xlane.f32.xlu0 %v614
      %v616 = vpop.xlane.xlu0 %615
      %v617 = vsel %vm302, %v585, 0.0
      %618 = vadd.xlane.f32.xlu0 %v617
      %v619 = vpop.xlane.xlu0 %618
      %v620 = vsel %vm302, %v586, 0.0
      %621 = vadd.xlane.f32.xlu0 %v620
      %v622 = vpop.xlane.xlu0 %621
      %v623 = vsel %vm302, %v587, 0.0
      %624 = vadd.xlane.f32.xlu0 %v623
      %v625 = vpop.xlane.xlu0 %624
      %v626 = vsel %vm302, %v588, 0.0
      %627 = vadd.xlane.f32.xlu0 %v626
      %v628 = vpop.xlane.xlu0 %627
      %v629 = vsel %vm302, %v589, 0.0
      %630 = vadd.xlane.f32.xlu0 %v629
      %v631 = vpop.xlane.xlu0 %630
      %v632 = vsel %vm302, %v590, 0.0
      %633 = vadd.xlane.f32.xlu0 %v632
      %v634 = vpop.xlane.xlu0 %633
      %v635 = vsel %vm302, %v591, 0.0
      %636 = vadd.xlane.f32.xlu0 %v635
      %v637 = vpop.xlane.xlu0 %636
      %v638 = vsel %vm302, %v592, 0.0
      %639 = vadd.xlane.f32.xlu0 %v638
      %v640 = vpop.xlane.xlu0 %639
      %v642 = vperm.slane %v269, 0
      %v643 = vperm.slane %v269, 1
      %v646 = vadd.f32 %v595, %v642
      %v647 = vadd.f32 %v595, %v643
      %v648 = vadd.f32 %v598, %v642
      %v649 = vadd.f32 %v598, %v643
      %v650 = vadd.f32 %v601, %v642
      %v651 = vadd.f32 %v601, %v643
      %v652 = vadd.f32 %v604, %v642
      %v653 = vadd.f32 %v604, %v643
      %v654 = vadd.f32 %v607, %v642
      %v655 = vadd.f32 %v607, %v643
      %v656 = vadd.f32 %v610, %v642
      %v657 = vadd.f32 %v610, %v643
      %v658 = vadd.f32 %v613, %v642
      %v659 = vadd.f32 %v613, %v643
      %v660 = vadd.f32 %v616, %v642
      %v661 = vadd.f32 %v616, %v643
      %v662 = vadd.f32 %v619, %v642
      %v663 = vadd.f32 %v619, %v643
      %v664 = vadd.f32 %v622, %v642
      %v665 = vadd.f32 %v622, %v643
      %v666 = vadd.f32 %v625, %v642
      %v667 = vadd.f32 %v625, %v643
      %v668 = vadd.f32 %v628, %v642
      %v669 = vadd.f32 %v628, %v643
      %v670 = vadd.f32 %v631, %v642
      %v671 = vadd.f32 %v631, %v643
      %v672 = vadd.f32 %v634, %v642
      %v673 = vadd.f32 %v634, %v643
      %v674 = vadd.f32 %v637, %v642
      %v675 = vadd.f32 %v637, %v643
      %v676 = vadd.f32 %v640, %v642
      %v677 = vadd.f32 %v640, %v643
      %v678 = vmul.f32 %v465, 2.0
      %v679 = vmul.f32 %v530, 2.0
      %v680 = vmul.f32 %v468, 2.0
      %v681 = vmul.f32 %v533, 2.0
      %v682 = vmul.f32 %v471, 2.0
      %v683 = vmul.f32 %v536, 2.0
      %v684 = vmul.f32 %v474, 2.0
      %v685 = vmul.f32 %v539, 2.0
      %v686 = vmul.f32 %v477, 2.0
      %v687 = vmul.f32 %v542, 2.0
      %v688 = vmul.f32 %v480, 2.0
      %v689 = vmul.f32 %v545, 2.0
      %v690 = vmul.f32 %v483, 2.0
      %v691 = vmul.f32 %v548, 2.0
      %v692 = vmul.f32 %v486, 2.0
      %v693 = vmul.f32 %v551, 2.0
      %v694 = vmul.f32 %v489, 2.0
      %v695 = vmul.f32 %v554, 2.0
      %v696 = vmul.f32 %v492, 2.0
      %v697 = vmul.f32 %v557, 2.0
      %v698 = vmul.f32 %v495, 2.0
      %v699 = vmul.f32 %v560, 2.0
      %v700 = vmul.f32 %v498, 2.0
      %v701 = vmul.f32 %v563, 2.0
      %v702 = vmul.f32 %v501, 2.0
      %v703 = vmul.f32 %v566, 2.0
      %v704 = vmul.f32 %v504, 2.0
      %v705 = vmul.f32 %v569, 2.0
      %v706 = vmul.f32 %v507, 2.0
      %v707 = vmul.f32 %v572, 2.0
      %v708 = vmul.f32 %v510, 2.0
      %v709 = vmul.f32 %v575, 2.0
      %v710 = vsub.f32 %v646, %v678
      %v711 = vsub.f32 %v647, %v679
      %v712 = vsub.f32 %v648, %v680
      %v713 = vsub.f32 %v649, %v681
      %v714 = vsub.f32 %v650, %v682
      %v715 = vsub.f32 %v651, %v683
      %v716 = vsub.f32 %v652, %v684
      %v717 = vsub.f32 %v653, %v685
      %v718 = vsub.f32 %v654, %v686
      %v719 = vsub.f32 %v655, %v687
      %v720 = vsub.f32 %v656, %v688
      %v721 = vsub.f32 %v657, %v689
      %v722 = vsub.f32 %v658, %v690
      %v723 = vsub.f32 %v659, %v691
      %v724 = vsub.f32 %v660, %v692
      %v725 = vsub.f32 %v661, %v693
      %v726 = vsub.f32 %v662, %v694
      %v727 = vsub.f32 %v663, %v695
      %v728 = vsub.f32 %v664, %v696
      %v729 = vsub.f32 %v665, %v697
      %v730 = vsub.f32 %v666, %v698
      %v731 = vsub.f32 %v667, %v699
      %v732 = vsub.f32 %v668, %v700
      %v733 = vsub.f32 %v669, %v701
      %v734 = vsub.f32 %v670, %v702
      %v735 = vsub.f32 %v671, %v703
      %v736 = vsub.f32 %v672, %v704
      %v737 = vsub.f32 %v673, %v705
      %v738 = vsub.f32 %v674, %v706
      %v739 = vsub.f32 %v675, %v707
      %v740 = vsub.f32 %v676, %v708
      %v741 = vsub.f32 %v677, %v709
      %v742 = vmax.f32 %v710, 0.0
      %v743 = vmax.f32 %v711, 0.0
      %v744 = vmax.f32 %v712, 0.0
      %v745 = vmax.f32 %v713, 0.0
      %v746 = vmax.f32 %v714, 0.0
      %v747 = vmax.f32 %v715, 0.0
      %v748 = vmax.f32 %v716, 0.0
      %v749 = vmax.f32 %v717, 0.0
      %v750 = vmax.f32 %v718, 0.0
      %v751 = vmax.f32 %v719, 0.0
      %v752 = vmax.f32 %v720, 0.0
      %v753 = vmax.f32 %v721, 0.0
      %v754 = vmax.f32 %v722, 0.0
      %v755 = vmax.f32 %v723, 0.0
      %v756 = vmax.f32 %v724, 0.0
      %v757 = vmax.f32 %v725, 0.0
      %v758 = vmax.f32 %v726, 0.0
      %v759 = vmax.f32 %v727, 0.0
      %v760 = vmax.f32 %v728, 0.0
      %v761 = vmax.f32 %v729, 0.0
      %v762 = vmax.f32 %v730, 0.0
      %v763 = vmax.f32 %v731, 0.0
      %v764 = vmax.f32 %v732, 0.0
      %v765 = vmax.f32 %v733, 0.0
      %v766 = vmax.f32 %v734, 0.0
      %v767 = vmax.f32 %v735, 0.0
      %v768 = vmax.f32 %v736, 0.0
      %v769 = vmax.f32 %v737, 0.0
      %v770 = vmax.f32 %v738, 0.0
      %v771 = vmax.f32 %v739, 0.0
      %v772 = vmax.f32 %v740, 0.0
      %v773 = vmax.f32 %v741, 0.0
      %v774 = vrsqrt.pop %v742
      %v775 = vmul.f32 %v774, %v742
      %v776 = vmul.f32 %v775, %v774
      %v777 = vmul.f32 0.5, %v776
      %v778 = vsub.f32 1.5, %v777
      %v779 = vmul.f32 %v774, %v778
      %v780 = vmul.f32 %v742, %v779
      %vm781 = vcmp.eq.f32.partialorder %v742, inf
      %v782 = vsel %vm781, %v742, %v780
      %vm783 = vcmp.eq.f32.partialorder %v742, 0.0
      %v784 = vand.u32 %v742, 2147483648
      %v785 = vsel %vm783, %v784, %v782
      %v786 = vrsqrt.pop %v743
      %v787 = vmul.f32 %v786, %v743
      %v788 = vmul.f32 %v787, %v786
      %v789 = vmul.f32 0.5, %v788
      %v790 = vsub.f32 1.5, %v789
      %v791 = vmul.f32 %v786, %v790
      %v792 = vmul.f32 %v743, %v791
      %vm793 = vcmp.eq.f32.partialorder %v743, inf
      %v794 = vsel %vm793, %v743, %v792
      %vm795 = vcmp.eq.f32.partialorder %v743, 0.0
      %v796 = vand.u32 %v743, 2147483648
      %v797 = vsel %vm795, %v796, %v794
      %v798 = vrsqrt.pop %v744
      %v799 = vmul.f32 %v798, %v744
      %v800 = vmul.f32 %v799, %v798
      %v801 = vmul.f32 0.5, %v800
      %v802 = vsub.f32 1.5, %v801
      %v803 = vmul.f32 %v798, %v802
      %v804 = vmul.f32 %v744, %v803
      %vm805 = vcmp.eq.f32.partialorder %v744, inf
      %v806 = vsel %vm805, %v744, %v804
      %vm807 = vcmp.eq.f32.partialorder %v744, 0.0
      %v808 = vand.u32 %v744, 2147483648
      %v809 = vsel %vm807, %v808, %v806
      %v810 = vrsqrt.pop %v745
      %v811 = vmul.f32 %v810, %v745
      %v812 = vmul.f32 %v811, %v810
      %v813 = vmul.f32 0.5, %v812
      %v814 = vsub.f32 1.5, %v813
      %v815 = vmul.f32 %v810, %v814
      %v816 = vmul.f32 %v745, %v815
      %vm817 = vcmp.eq.f32.partialorder %v745, inf
      %v818 = vsel %vm817, %v745, %v816
      %vm819 = vcmp.eq.f32.partialorder %v745, 0.0
      %v820 = vand.u32 %v745, 2147483648
      %v821 = vsel %vm819, %v820, %v818
      %v822 = vrsqrt.pop %v746
      %v823 = vmul.f32 %v822, %v746
      %v824 = vmul.f32 %v823, %v822
      %v825 = vmul.f32 0.5, %v824
      %v826 = vsub.f32 1.5, %v825
      %v827 = vmul.f32 %v822, %v826
      %v828 = vmul.f32 %v746, %v827
      %vm829 = vcmp.eq.f32.partialorder %v746, inf
      %v830 = vsel %vm829, %v746, %v828
      %vm831 = vcmp.eq.f32.partialorder %v746, 0.0
      %v832 = vand.u32 %v746, 2147483648
      %v833 = vsel %vm831, %v832, %v830
      %v834 = vrsqrt.pop %v747
      %v835 = vmul.f32 %v834, %v747
      %v836 = vmul.f32 %v835, %v834
      %v837 = vmul.f32 0.5, %v836
      %v838 = vsub.f32 1.5, %v837
      %v839 = vmul.f32 %v834, %v838
      %v840 = vmul.f32 %v747, %v839
      %vm841 = vcmp.eq.f32.partialorder %v747, inf
      %v842 = vsel %vm841, %v747, %v840
      %vm843 = vcmp.eq.f32.partialorder %v747, 0.0
      %v844 = vand.u32 %v747, 2147483648
      %v845 = vsel %vm843, %v844, %v842
      %v846 = vrsqrt.pop %v748
      %v847 = vmul.f32 %v846, %v748
      %v848 = vmul.f32 %v847, %v846
      %v849 = vmul.f32 0.5, %v848
      %v850 = vsub.f32 1.5, %v849
      %v851 = vmul.f32 %v846, %v850
      %v852 = vmul.f32 %v748, %v851
      %vm853 = vcmp.eq.f32.partialorder %v748, inf
      %v854 = vsel %vm853, %v748, %v852
      %vm855 = vcmp.eq.f32.partialorder %v748, 0.0
      %v856 = vand.u32 %v748, 2147483648
      %v857 = vsel %vm855, %v856, %v854
      %v858 = vrsqrt.pop %v749
      %v859 = vmul.f32 %v858, %v749
      %v860 = vmul.f32 %v859, %v858
      %v861 = vmul.f32 0.5, %v860
      %v862 = vsub.f32 1.5, %v861
      %v863 = vmul.f32 %v858, %v862
      %v864 = vmul.f32 %v749, %v863
      %vm865 = vcmp.eq.f32.partialorder %v749, inf
      %v866 = vsel %vm865, %v749, %v864
      %vm867 = vcmp.eq.f32.partialorder %v749, 0.0
      %v868 = vand.u32 %v749, 2147483648
      %v869 = vsel %vm867, %v868, %v866
      %v870 = vrsqrt.pop %v750
      %v871 = vmul.f32 %v870, %v750
      %v872 = vmul.f32 %v871, %v870
      %v873 = vmul.f32 0.5, %v872
      %v874 = vsub.f32 1.5, %v873
      %v875 = vmul.f32 %v870, %v874
      %v876 = vmul.f32 %v750, %v875
      %vm877 = vcmp.eq.f32.partialorder %v750, inf
      %v878 = vsel %vm877, %v750, %v876
      %vm879 = vcmp.eq.f32.partialorder %v750, 0.0
      %v880 = vand.u32 %v750, 2147483648
      %v881 = vsel %vm879, %v880, %v878
      %v882 = vrsqrt.pop %v751
      %v883 = vmul.f32 %v882, %v751
      %v884 = vmul.f32 %v883, %v882
      %v885 = vmul.f32 0.5, %v884
      %v886 = vsub.f32 1.5, %v885
      %v887 = vmul.f32 %v882, %v886
      %v888 = vmul.f32 %v751, %v887
      %vm889 = vcmp.eq.f32.partialorder %v751, inf
      %v890 = vsel %vm889, %v751, %v888
      %vm891 = vcmp.eq.f32.partialorder %v751, 0.0
      %v892 = vand.u32 %v751, 2147483648
      %v893 = vsel %vm891, %v892, %v890
      %v894 = vrsqrt.pop %v752
      %v895 = vmul.f32 %v894, %v752
      %v896 = vmul.f32 %v895, %v894
      %v897 = vmul.f32 0.5, %v896
      %v898 = vsub.f32 1.5, %v897
      %v899 = vmul.f32 %v894, %v898
      %v900 = vmul.f32 %v752, %v899
      %vm901 = vcmp.eq.f32.partialorder %v752, inf
      %v902 = vsel %vm901, %v752, %v900
      %vm903 = vcmp.eq.f32.partialorder %v752, 0.0
      %v904 = vand.u32 %v752, 2147483648
      %v905 = vsel %vm903, %v904, %v902
      %v906 = vrsqrt.pop %v753
      %v907 = vmul.f32 %v906, %v753
      %v908 = vmul.f32 %v907, %v906
      %v909 = vmul.f32 0.5, %v908
      %v910 = vsub.f32 1.5, %v909
      %v911 = vmul.f32 %v906, %v910
      %v912 = vmul.f32 %v753, %v911
      %vm913 = vcmp.eq.f32.partialorder %v753, inf
      %v914 = vsel %vm913, %v753, %v912
      %vm915 = vcmp.eq.f32.partialorder %v753, 0.0
      %v916 = vand.u32 %v753, 2147483648
      %v917 = vsel %vm915, %v916, %v914
      %v918 = vrsqrt.pop %v754
      %v919 = vmul.f32 %v918, %v754
      %v920 = vmul.f32 %v919, %v918
      %v921 = vmul.f32 0.5, %v920
      %v922 = vsub.f32 1.5, %v921
      %v923 = vmul.f32 %v918, %v922
      %v924 = vmul.f32 %v754, %v923
      %vm925 = vcmp.eq.f32.partialorder %v754, inf
      %v926 = vsel %vm925, %v754, %v924
      %vm927 = vcmp.eq.f32.partialorder %v754, 0.0
      %v928 = vand.u32 %v754, 2147483648
      %v929 = vsel %vm927, %v928, %v926
      %v930 = vrsqrt.pop %v755
      %v931 = vmul.f32 %v930, %v755
      %v932 = vmul.f32 %v931, %v930
      %v933 = vmul.f32 0.5, %v932
      %v934 = vsub.f32 1.5, %v933
      %v935 = vmul.f32 %v930, %v934
      %v936 = vmul.f32 %v755, %v935
      %vm937 = vcmp.eq.f32.partialorder %v755, inf
      %v938 = vsel %vm937, %v755, %v936
      %vm939 = vcmp.eq.f32.partialorder %v755, 0.0
      %v940 = vand.u32 %v755, 2147483648
      %v941 = vsel %vm939, %v940, %v938
      %v942 = vrsqrt.pop %v756
      %v943 = vmul.f32 %v942, %v756
      %v944 = vmul.f32 %v943, %v942
      %v945 = vmul.f32 0.5, %v944
      %v946 = vsub.f32 1.5, %v945
      %v947 = vmul.f32 %v942, %v946
      %v948 = vmul.f32 %v756, %v947
      %vm949 = vcmp.eq.f32.partialorder %v756, inf
      %v950 = vsel %vm949, %v756, %v948
      %vm951 = vcmp.eq.f32.partialorder %v756, 0.0
      %v952 = vand.u32 %v756, 2147483648
      %v953 = vsel %vm951, %v952, %v950
      %v954 = vrsqrt.pop %v757
      %v955 = vmul.f32 %v954, %v757
      %v956 = vmul.f32 %v955, %v954
      %v957 = vmul.f32 0.5, %v956
      %v958 = vsub.f32 1.5, %v957
      %v959 = vmul.f32 %v954, %v958
      %v960 = vmul.f32 %v757, %v959
      %vm961 = vcmp.eq.f32.partialorder %v757, inf
      %v962 = vsel %vm961, %v757, %v960
      %vm963 = vcmp.eq.f32.partialorder %v757, 0.0
      %v964 = vand.u32 %v757, 2147483648
      %v965 = vsel %vm963, %v964, %v962
      %v966 = vrsqrt.pop %v758
      %v967 = vmul.f32 %v966, %v758
      %v968 = vmul.f32 %v967, %v966
      %v969 = vmul.f32 0.5, %v968
      %v970 = vsub.f32 1.5, %v969
      %v971 = vmul.f32 %v966, %v970
      %v972 = vmul.f32 %v758, %v971
      %vm973 = vcmp.eq.f32.partialorder %v758, inf
      %v974 = vsel %vm973, %v758, %v972
      %vm975 = vcmp.eq.f32.partialorder %v758, 0.0
      %v976 = vand.u32 %v758, 2147483648
      %v977 = vsel %vm975, %v976, %v974
      %v978 = vrsqrt.pop %v759
      %v979 = vmul.f32 %v978, %v759
      %v980 = vmul.f32 %v979, %v978
      %v981 = vmul.f32 0.5, %v980
      %v982 = vsub.f32 1.5, %v981
      %v983 = vmul.f32 %v978, %v982
      %v984 = vmul.f32 %v759, %v983
      %vm985 = vcmp.eq.f32.partialorder %v759, inf
      %v986 = vsel %vm985, %v759, %v984
      %vm987 = vcmp.eq.f32.partialorder %v759, 0.0
      %v988 = vand.u32 %v759, 2147483648
      %v989 = vsel %vm987, %v988, %v986
      %v990 = vrsqrt.pop %v760
      %v991 = vmul.f32 %v990, %v760
      %v992 = vmul.f32 %v991, %v990
      %v993 = vmul.f32 0.5, %v992
      %v994 = vsub.f32 1.5, %v993
      %v995 = vmul.f32 %v990, %v994
      %v996 = vmul.f32 %v760, %v995
      %vm997 = vcmp.eq.f32.partialorder %v760, inf
      %v998 = vsel %vm997, %v760, %v996
      %vm999 = vcmp.eq.f32.partialorder %v760, 0.0
      %v1000 = vand.u32 %v760, 2147483648
      %v1001 = vsel %vm999, %v1000, %v998
      %v1002 = vrsqrt.pop %v761
      %v1003 = vmul.f32 %v1002, %v761
      %v1004 = vmul.f32 %v1003, %v1002
      %v1005 = vmul.f32 0.5, %v1004
      %v1006 = vsub.f32 1.5, %v1005
      %v1007 = vmul.f32 %v1002, %v1006
      %v1008 = vmul.f32 %v761, %v1007
      %vm1009 = vcmp.eq.f32.partialorder %v761, inf
      %v1010 = vsel %vm1009, %v761, %v1008
      %vm1011 = vcmp.eq.f32.partialorder %v761, 0.0
      %v1012 = vand.u32 %v761, 2147483648
      %v1013 = vsel %vm1011, %v1012, %v1010
      %v1014 = vrsqrt.pop %v762
      %v1015 = vmul.f32 %v1014, %v762
      %v1016 = vmul.f32 %v1015, %v1014
      %v1017 = vmul.f32 0.5, %v1016
      %v1018 = vsub.f32 1.5, %v1017
      %v1019 = vmul.f32 %v1014, %v1018
      %v1020 = vmul.f32 %v762, %v1019
      %vm1021 = vcmp.eq.f32.partialorder %v762, inf
      %v1022 = vsel %vm1021, %v762, %v1020
      %vm1023 = vcmp.eq.f32.partialorder %v762, 0.0
      %v1024 = vand.u32 %v762, 2147483648
      %v1025 = vsel %vm1023, %v1024, %v1022
      %v1026 = vrsqrt.pop %v763
      %v1027 = vmul.f32 %v1026, %v763
      %v1028 = vmul.f32 %v1027, %v1026
      %v1029 = vmul.f32 0.5, %v1028
      %v1030 = vsub.f32 1.5, %v1029
      %v1031 = vmul.f32 %v1026, %v1030
      %v1032 = vmul.f32 %v763, %v1031
      %vm1033 = vcmp.eq.f32.partialorder %v763, inf
      %v1034 = vsel %vm1033, %v763, %v1032
      %vm1035 = vcmp.eq.f32.partialorder %v763, 0.0
      %v1036 = vand.u32 %v763, 2147483648
      %v1037 = vsel %vm1035, %v1036, %v1034
      %v1038 = vrsqrt.pop %v764
      %v1039 = vmul.f32 %v1038, %v764
      %v1040 = vmul.f32 %v1039, %v1038
      %v1041 = vmul.f32 0.5, %v1040
      %v1042 = vsub.f32 1.5, %v1041
      %v1043 = vmul.f32 %v1038, %v1042
      %v1044 = vmul.f32 %v764, %v1043
      %vm1045 = vcmp.eq.f32.partialorder %v764, inf
      %v1046 = vsel %vm1045, %v764, %v1044
      %vm1047 = vcmp.eq.f32.partialorder %v764, 0.0
      %v1048 = vand.u32 %v764, 2147483648
      %v1049 = vsel %vm1047, %v1048, %v1046
      %v1050 = vrsqrt.pop %v765
      %v1051 = vmul.f32 %v1050, %v765
      %v1052 = vmul.f32 %v1051, %v1050
      %v1053 = vmul.f32 0.5, %v1052
      %v1054 = vsub.f32 1.5, %v1053
      %v1055 = vmul.f32 %v1050, %v1054
      %v1056 = vmul.f32 %v765, %v1055
      %vm1057 = vcmp.eq.f32.partialorder %v765, inf
      %v1058 = vsel %vm1057, %v765, %v1056
      %vm1059 = vcmp.eq.f32.partialorder %v765, 0.0
      %v1060 = vand.u32 %v765, 2147483648
      %v1061 = vsel %vm1059, %v1060, %v1058
      %v1062 = vrsqrt.pop %v766
      %v1063 = vmul.f32 %v1062, %v766
      %v1064 = vmul.f32 %v1063, %v1062
      %v1065 = vmul.f32 0.5, %v1064
      %v1066 = vsub.f32 1.5, %v1065
      %v1067 = vmul.f32 %v1062, %v1066
      %v1068 = vmul.f32 %v766, %v1067
      %vm1069 = vcmp.eq.f32.partialorder %v766, inf
      %v1070 = vsel %vm1069, %v766, %v1068
      %vm1071 = vcmp.eq.f32.partialorder %v766, 0.0
      %v1072 = vand.u32 %v766, 2147483648
      %v1073 = vsel %vm1071, %v1072, %v1070
      %v1074 = vrsqrt.pop %v767
      %v1075 = vmul.f32 %v1074, %v767
      %v1076 = vmul.f32 %v1075, %v1074
      %v1077 = vmul.f32 0.5, %v1076
      %v1078 = vsub.f32 1.5, %v1077
      %v1079 = vmul.f32 %v1074, %v1078
      %v1080 = vmul.f32 %v767, %v1079
      %vm1081 = vcmp.eq.f32.partialorder %v767, inf
      %v1082 = vsel %vm1081, %v767, %v1080
      %vm1083 = vcmp.eq.f32.partialorder %v767, 0.0
      %v1084 = vand.u32 %v767, 2147483648
      %v1085 = vsel %vm1083, %v1084, %v1082
      %v1086 = vrsqrt.pop %v768
      %v1087 = vmul.f32 %v1086, %v768
      %v1088 = vmul.f32 %v1087, %v1086
      %v1089 = vmul.f32 0.5, %v1088
      %v1090 = vsub.f32 1.5, %v1089
      %v1091 = vmul.f32 %v1086, %v1090
      %v1092 = vmul.f32 %v768, %v1091
      %vm1093 = vcmp.eq.f32.partialorder %v768, inf
      %v1094 = vsel %vm1093, %v768, %v1092
      %vm1095 = vcmp.eq.f32.partialorder %v768, 0.0
      %v1096 = vand.u32 %v768, 2147483648
      %v1097 = vsel %vm1095, %v1096, %v1094
      %v1098 = vrsqrt.pop %v769
      %v1099 = vmul.f32 %v1098, %v769
      %v1100 = vmul.f32 %v1099, %v1098
      %v1101 = vmul.f32 0.5, %v1100
      %v1102 = vsub.f32 1.5, %v1101
      %v1103 = vmul.f32 %v1098, %v1102
      %v1104 = vmul.f32 %v769, %v1103
      %vm1105 = vcmp.eq.f32.partialorder %v769, inf
      %v1106 = vsel %vm1105, %v769, %v1104
      %vm1107 = vcmp.eq.f32.partialorder %v769, 0.0
      %v1108 = vand.u32 %v769, 2147483648
      %v1109 = vsel %vm1107, %v1108, %v1106
      %v1110 = vrsqrt.pop %v770
      %v1111 = vmul.f32 %v1110, %v770
      %v1112 = vmul.f32 %v1111, %v1110
      %v1113 = vmul.f32 0.5, %v1112
      %v1114 = vsub.f32 1.5, %v1113
      %v1115 = vmul.f32 %v1110, %v1114
      %v1116 = vmul.f32 %v770, %v1115
      %vm1117 = vcmp.eq.f32.partialorder %v770, inf
      %v1118 = vsel %vm1117, %v770, %v1116
      %vm1119 = vcmp.eq.f32.partialorder %v770, 0.0
      %v1120 = vand.u32 %v770, 2147483648
      %v1121 = vsel %vm1119, %v1120, %v1118
      %v1122 = vrsqrt.pop %v771
      %v1123 = vmul.f32 %v1122, %v771
      %v1124 = vmul.f32 %v1123, %v1122
      %v1125 = vmul.f32 0.5, %v1124
      %v1126 = vsub.f32 1.5, %v1125
      %v1127 = vmul.f32 %v1122, %v1126
      %v1128 = vmul.f32 %v771, %v1127
      %vm1129 = vcmp.eq.f32.partialorder %v771, inf
      %v1130 = vsel %vm1129, %v771, %v1128
      %vm1131 = vcmp.eq.f32.partialorder %v771, 0.0
      %v1132 = vand.u32 %v771, 2147483648
      %v1133 = vsel %vm1131, %v1132, %v1130
      %v1134 = vrsqrt.pop %v772
      %v1135 = vmul.f32 %v1134, %v772
      %v1136 = vmul.f32 %v1135, %v1134
      %v1137 = vmul.f32 0.5, %v1136
      %v1138 = vsub.f32 1.5, %v1137
      %v1139 = vmul.f32 %v1134, %v1138
      %v1140 = vmul.f32 %v772, %v1139
      %vm1141 = vcmp.eq.f32.partialorder %v772, inf
      %v1142 = vsel %vm1141, %v772, %v1140
      %vm1143 = vcmp.eq.f32.partialorder %v772, 0.0
      %v1144 = vand.u32 %v772, 2147483648
      %v1145 = vsel %vm1143, %v1144, %v1142
      %v1146 = vrsqrt.pop %v773
      %v1147 = vmul.f32 %v1146, %v773
      %v1148 = vmul.f32 %v1147, %v1146
      %v1149 = vmul.f32 0.5, %v1148
      %v1150 = vsub.f32 1.5, %v1149
      %v1151 = vmul.f32 %v1146, %v1150
      %v1152 = vmul.f32 %v773, %v1151
      %vm1153 = vcmp.eq.f32.partialorder %v773, inf
      %v1154 = vsel %vm1153, %v773, %v1152
      %vm1155 = vcmp.eq.f32.partialorder %v773, 0.0
      %v1156 = vand.u32 %v773, 2147483648
      %v1157 = vsel %vm1155, %v1156, %v1154
      %v1158 = vsub.f32 0.0, %v785
      %v1159 = vsub.f32 0.0, %v797
      %v1160 = vsub.f32 0.0, %v809
      %v1161 = vsub.f32 0.0, %v821
      %v1162 = vsub.f32 0.0, %v833
      %v1163 = vsub.f32 0.0, %v845
      %v1164 = vsub.f32 0.0, %v857
      %v1165 = vsub.f32 0.0, %v869
      %v1166 = vsub.f32 0.0, %v881
      %v1167 = vsub.f32 0.0, %v893
      %v1168 = vsub.f32 0.0, %v905
      %v1169 = vsub.f32 0.0, %v917
      %v1170 = vsub.f32 0.0, %v929
      %v1171 = vsub.f32 0.0, %v941
      %v1172 = vsub.f32 0.0, %v953
      %v1173 = vsub.f32 0.0, %v965
      %v1174 = vsub.f32 0.0, %v977
      %v1175 = vsub.f32 0.0, %v989
      %v1176 = vsub.f32 0.0, %v1001
      %v1177 = vsub.f32 0.0, %v1013
      %v1178 = vsub.f32 0.0, %v1025
      %v1179 = vsub.f32 0.0, %v1037
      %v1180 = vsub.f32 0.0, %v1049
      %v1181 = vsub.f32 0.0, %v1061
      %v1182 = vsub.f32 0.0, %v1073
      %v1183 = vsub.f32 0.0, %v1085
      %v1184 = vsub.f32 0.0, %v1097
      %v1185 = vsub.f32 0.0, %v1109
      %v1186 = vsub.f32 0.0, %v1121
      %v1187 = vsub.f32 0.0, %v1133
      %v1188 = vsub.f32 0.0, %v1145
      %v1189 = vsub.f32 0.0, %v1157
      %v1190 = vmul.f32 %v1158, 1.442695
      %v1191 = vpow.pop %v1190
      %v1192 = vmul.f32 %v1159, 1.442695
      %v1193 = vpow.pop %v1192
      %v1194 = vmul.f32 %v1160, 1.442695
      %v1195 = vpow.pop %v1194
      %v1196 = vmul.f32 %v1161, 1.442695
      %v1197 = vpow.pop %v1196
      %v1198 = vmul.f32 %v1162, 1.442695
      %v1199 = vpow.pop %v1198
      %v1200 = vmul.f32 %v1163, 1.442695
      %v1201 = vpow.pop %v1200
      %v1202 = vmul.f32 %v1164, 1.442695
      %v1203 = vpow.pop %v1202
      %v1204 = vmul.f32 %v1165, 1.442695
      %v1205 = vpow.pop %v1204
      %v1206 = vmul.f32 %v1166, 1.442695
      %v1207 = vpow.pop %v1206
      %v1208 = vmul.f32 %v1167, 1.442695
      %v1209 = vpow.pop %v1208
      %v1210 = vmul.f32 %v1168, 1.442695
      %v1211 = vpow.pop %v1210
      %v1212 = vmul.f32 %v1169, 1.442695
      %v1213 = vpow.pop %v1212
      %v1214 = vmul.f32 %v1170, 1.442695
      %v1215 = vpow.pop %v1214
      %v1216 = vmul.f32 %v1171, 1.442695
      %v1217 = vpow.pop %v1216
      %v1218 = vmul.f32 %v1172, 1.442695
      %v1219 = vpow.pop %v1218
      %v1220 = vmul.f32 %v1173, 1.442695
      %v1221 = vpow.pop %v1220
      %v1222 = vmul.f32 %v1174, 1.442695
      %v1223 = vpow.pop %v1222
      %v1224 = vmul.f32 %v1175, 1.442695
      %v1225 = vpow.pop %v1224
      %v1226 = vmul.f32 %v1176, 1.442695
      %v1227 = vpow.pop %v1226
      %v1228 = vmul.f32 %v1177, 1.442695
      %v1229 = vpow.pop %v1228
      %v1230 = vmul.f32 %v1178, 1.442695
      %v1231 = vpow.pop %v1230
      %v1232 = vmul.f32 %v1179, 1.442695
      %v1233 = vpow.pop %v1232
      %v1234 = vmul.f32 %v1180, 1.442695
      %v1235 = vpow.pop %v1234
      %v1236 = vmul.f32 %v1181, 1.442695
      %v1237 = vpow.pop %v1236
      %v1238 = vmul.f32 %v1182, 1.442695
      %v1239 = vpow.pop %v1238
      %v1240 = vmul.f32 %v1183, 1.442695
      %v1241 = vpow.pop %v1240
      %v1242 = vmul.f32 %v1184, 1.442695
      %v1243 = vpow.pop %v1242
      %v1244 = vmul.f32 %v1185, 1.442695
      %v1245 = vpow.pop %v1244
      %v1246 = vmul.f32 %v1186, 1.442695
      %v1247 = vpow.pop %v1246
      %v1248 = vmul.f32 %v1187, 1.442695
      %v1249 = vpow.pop %v1248
      %v1250 = vmul.f32 %v1188, 1.442695
      %v1251 = vpow.pop %v1250
      %v1252 = vmul.f32 %v1189, 1.442695
      %v1253 = vpow.pop %v1252
      %v1254 = vsub.f32 %v1191, %v270
      %v1255 = vsub.f32 %v1193, %v271
      %v1256 = vsub.f32 %v1195, %v272
      %v1257 = vsub.f32 %v1197, %v273
      %v1258 = vsub.f32 %v1199, %v274
      %v1259 = vsub.f32 %v1201, %v275
      %v1260 = vsub.f32 %v1203, %v276
      %v1261 = vsub.f32 %v1205, %v277
      %v1262 = vsub.f32 %v1207, %v278
      %v1263 = vsub.f32 %v1209, %v279
      %v1264 = vsub.f32 %v1211, %v280
      %v1265 = vsub.f32 %v1213, %v281
      %v1266 = vsub.f32 %v1215, %v282
      %v1267 = vsub.f32 %v1217, %v283
      %v1268 = vsub.f32 %v1219, %v284
      %v1269 = vsub.f32 %v1221, %v285
      %v1270 = vsub.f32 %v1223, %v286
      %v1271 = vsub.f32 %v1225, %v287
      %v1272 = vsub.f32 %v1227, %v288
      %v1273 = vsub.f32 %v1229, %v289
      %v1274 = vsub.f32 %v1231, %v290
      %v1275 = vsub.f32 %v1233, %v291
      %v1276 = vsub.f32 %v1235, %v292
      %v1277 = vsub.f32 %v1237, %v293
      %v1278 = vsub.f32 %v1239, %v294
      %v1279 = vsub.f32 %v1241, %v295
      %v1280 = vsub.f32 %v1243, %v296
      %v1281 = vsub.f32 %v1245, %v297
      %v1282 = vsub.f32 %v1247, %v298
      %v1283 = vsub.f32 %v1249, %v299
      %v1284 = vsub.f32 %v1251, %v300
      %v1285 = vsub.f32 %v1253, %v301
      %s1286 = smul.u32 %s15, 128
      %v1287 = vlaneseq
      %v1288 = vshrl.u32 %v1287, 7
      %v1289 = vadd.s32 %v1288, 8
      %v1290 = vadd.s32 %v1288, 16
      %v1291 = vadd.s32 %v1288, 24
      %v1292 = vadd.s32 %v1288, 32
      %v1293 = vadd.s32 %v1288, 40
      %v1294 = vadd.s32 %v1288, 48
      %v1295 = vadd.s32 %v1288, 56
      %v1296 = vadd.s32 %v1288, 64
      %v1297 = vadd.s32 %v1288, 72
      %v1298 = vadd.s32 %v1288, 80
      %v1299 = vadd.s32 %v1288, 88
      %v1300 = vadd.s32 %v1288, 96
      %v1301 = vadd.s32 %v1288, 104
      %v1302 = vadd.s32 %v1288, 112
      %v1303 = vadd.s32 %v1288, 120
      %v1304 = vstv %s1286
      %v1305 = vadd.s32 %v1304, %v1288
      %v1306 = vadd.s32 %v1304, %v1289
      %v1307 = vadd.s32 %v1304, %v1290
      %v1308 = vadd.s32 %v1304, %v1291
      %v1309 = vadd.s32 %v1304, %v1292
      %v1310 = vadd.s32 %v1304, %v1293
      %v1311 = vadd.s32 %v1304, %v1294
      %v1312 = vadd.s32 %v1304, %v1295
      %v1313 = vadd.s32 %v1304, %v1296
      %v1314 = vadd.s32 %v1304, %v1297
      %v1315 = vadd.s32 %v1304, %v1298
      %v1316 = vadd.s32 %v1304, %v1299
      %v1317 = vadd.s32 %v1304, %v1300
      %v1318 = vadd.s32 %v1304, %v1301
      %v1319 = vadd.s32 %v1304, %v1302
      %v1320 = vadd.s32 %v1304, %v1303
      %v1321 = vlaneseq
      %v1322 = vand.u32 %v1321, 127
      %v1323 = vadd.s32 %v1322, 128
      %vm1324 = vcmp.lt.s32.totalorder %v1305, 200
      %vm1325 = vcmp.lt.s32.totalorder %v1306, 200
      %vm1326 = vcmp.lt.s32.totalorder %v1307, 200
      %vm1327 = vcmp.lt.s32.totalorder %v1308, 200
      %vm1328 = vcmp.lt.s32.totalorder %v1309, 200
      %vm1329 = vcmp.lt.s32.totalorder %v1310, 200
      %vm1330 = vcmp.lt.s32.totalorder %v1311, 200
      %vm1331 = vcmp.lt.s32.totalorder %v1312, 200
      %vm1332 = vcmp.lt.s32.totalorder %v1313, 200
      %vm1333 = vcmp.lt.s32.totalorder %v1314, 200
      %vm1334 = vcmp.lt.s32.totalorder %v1315, 200
      %vm1335 = vcmp.lt.s32.totalorder %v1316, 200
      %vm1336 = vcmp.lt.s32.totalorder %v1317, 200
      %vm1337 = vcmp.lt.s32.totalorder %v1318, 200
      %vm1338 = vcmp.lt.s32.totalorder %v1319, 200
      %vm1339 = vcmp.lt.s32.totalorder %v1320, 200
      %vm1340 = vcmp.lt.s32.totalorder %v1322, 150
      %vm1341 = vcmp.lt.s32.totalorder %v1323, 150
      %vm1342 = vmand %vm1324, %vm1340
      %vm1343 = vmand %vm1324, %vm1341
      %vm1344 = vmand %vm1325, %vm1340
      %vm1345 = vmand %vm1325, %vm1341
      %vm1346 = vmand %vm1326, %vm1340
      %vm1347 = vmand %vm1326, %vm1341
      %vm1348 = vmand %vm1327, %vm1340
      %vm1349 = vmand %vm1327, %vm1341
      %vm1350 = vmand %vm1328, %vm1340
      %vm1351 = vmand %vm1328, %vm1341
      %vm1352 = vmand %vm1329, %vm1340
      %vm1353 = vmand %vm1329, %vm1341
      %vm1354 = vmand %vm1330, %vm1340
      %vm1355 = vmand %vm1330, %vm1341
      %vm1356 = vmand %vm1331, %vm1340
      %vm1357 = vmand %vm1331, %vm1341
      %vm1358 = vmand %vm1332, %vm1340
      %vm1359 = vmand %vm1332, %vm1341
      %vm1360 = vmand %vm1333, %vm1340
      %vm1361 = vmand %vm1333, %vm1341
      %vm1362 = vmand %vm1334, %vm1340
      %vm1363 = vmand %vm1334, %vm1341
      %vm1364 = vmand %vm1335, %vm1340
      %vm1365 = vmand %vm1335, %vm1341
      %vm1366 = vmand %vm1336, %vm1340
      %vm1367 = vmand %vm1336, %vm1341
      %vm1368 = vmand %vm1337, %vm1340
      %vm1369 = vmand %vm1337, %vm1341
      %vm1370 = vmand %vm1338, %vm1340
      %vm1371 = vmand %vm1338, %vm1341
      %vm1372 = vmand %vm1339, %vm1340
      %vm1373 = vmand %vm1339, %vm1341
      %v1374 = vsel %vm1342, %v1254, 0.0
      %v1375 = vsel %vm1343, %v1255, 0.0
      %v1376 = vsel %vm1344, %v1256, 0.0
      %v1377 = vsel %vm1345, %v1257, 0.0
      %v1378 = vsel %vm1346, %v1258, 0.0
      %v1379 = vsel %vm1347, %v1259, 0.0
      %v1380 = vsel %vm1348, %v1260, 0.0
      %v1381 = vsel %vm1349, %v1261, 0.0
      %v1382 = vsel %vm1350, %v1262, 0.0
      %v1383 = vsel %vm1351, %v1263, 0.0
      %v1384 = vsel %vm1352, %v1264, 0.0
      %v1385 = vsel %vm1353, %v1265, 0.0
      %v1386 = vsel %vm1354, %v1266, 0.0
      %v1387 = vsel %vm1355, %v1267, 0.0
      %v1388 = vsel %vm1356, %v1268, 0.0
      %v1389 = vsel %vm1357, %v1269, 0.0
      %v1390 = vsel %vm1358, %v1270, 0.0
      %v1391 = vsel %vm1359, %v1271, 0.0
      %v1392 = vsel %vm1360, %v1272, 0.0
      %v1393 = vsel %vm1361, %v1273, 0.0
      %v1394 = vsel %vm1362, %v1274, 0.0
      %v1395 = vsel %vm1363, %v1275, 0.0
      %v1396 = vsel %vm1364, %v1276, 0.0
      %v1397 = vsel %vm1365, %v1277, 0.0
      %v1398 = vsel %vm1366, %v1278, 0.0
      %v1399 = vsel %vm1367, %v1279, 0.0
      %v1400 = vsel %vm1368, %v1280, 0.0
      %v1401 = vsel %vm1369, %v1281, 0.0
      %v1402 = vsel %vm1370, %v1282, 0.0
      %v1403 = vsel %vm1371, %v1283, 0.0
      %v1404 = vsel %vm1372, %v1284, 0.0
      %v1405 = vsel %vm1373, %v1285, 0.0
      %v1406 = vmul.f32 %v1374, %v1374
      %v1407 = vmul.f32 %v1375, %v1375
      %v1408 = vmul.f32 %v1376, %v1376
      %v1409 = vmul.f32 %v1377, %v1377
      %v1410 = vmul.f32 %v1378, %v1378
      %v1411 = vmul.f32 %v1379, %v1379
      %v1412 = vmul.f32 %v1380, %v1380
      %v1413 = vmul.f32 %v1381, %v1381
      %v1414 = vmul.f32 %v1382, %v1382
      %v1415 = vmul.f32 %v1383, %v1383
      %v1416 = vmul.f32 %v1384, %v1384
      %v1417 = vmul.f32 %v1385, %v1385
      %v1418 = vmul.f32 %v1386, %v1386
      %v1419 = vmul.f32 %v1387, %v1387
      %v1420 = vmul.f32 %v1388, %v1388
      %v1421 = vmul.f32 %v1389, %v1389
      %v1422 = vmul.f32 %v1390, %v1390
      %v1423 = vmul.f32 %v1391, %v1391
      %v1424 = vmul.f32 %v1392, %v1392
      %v1425 = vmul.f32 %v1393, %v1393
      %v1426 = vmul.f32 %v1394, %v1394
      %v1427 = vmul.f32 %v1395, %v1395
      %v1428 = vmul.f32 %v1396, %v1396
      %v1429 = vmul.f32 %v1397, %v1397
      %v1430 = vmul.f32 %v1398, %v1398
      %v1431 = vmul.f32 %v1399, %v1399
      %v1432 = vmul.f32 %v1400, %v1400
      %v1433 = vmul.f32 %v1401, %v1401
      %v1434 = vmul.f32 %v1402, %v1402
      %v1435 = vmul.f32 %v1403, %v1403
      %v1436 = vmul.f32 %v1404, %v1404
      %v1437 = vmul.f32 %v1405, %v1405
      %v1438 = vadd.f32 %v1406, %v1407
      %v1439 = vadd.f32 %v1438, %v1408
      %v1440 = vadd.f32 %v1439, %v1409
      %v1441 = vadd.f32 %v1440, %v1410
      %v1442 = vadd.f32 %v1441, %v1411
      %v1443 = vadd.f32 %v1442, %v1412
      %v1444 = vadd.f32 %v1443, %v1413
      %v1445 = vadd.f32 %v1444, %v1414
      %v1446 = vadd.f32 %v1445, %v1415
      %v1447 = vadd.f32 %v1446, %v1416
      %v1448 = vadd.f32 %v1447, %v1417
      %v1449 = vadd.f32 %v1448, %v1418
      %v1450 = vadd.f32 %v1449, %v1419
      %v1451 = vadd.f32 %v1450, %v1420
      %v1452 = vadd.f32 %v1451, %v1421
      %v1453 = vadd.f32 %v1452, %v1422
      %v1454 = vadd.f32 %v1453, %v1423
      %v1455 = vadd.f32 %v1454, %v1424
      %v1456 = vadd.f32 %v1455, %v1425
      %v1457 = vadd.f32 %v1456, %v1426
      %v1458 = vadd.f32 %v1457, %v1427
      %v1459 = vadd.f32 %v1458, %v1428
      %v1460 = vadd.f32 %v1459, %v1429
      %v1461 = vadd.f32 %v1460, %v1430
      %v1462 = vadd.f32 %v1461, %v1431
      %v1463 = vadd.f32 %v1462, %v1432
      %v1464 = vadd.f32 %v1463, %v1433
      %v1465 = vadd.f32 %v1464, %v1434
      %v1466 = vadd.f32 %v1465, %v1435
      %v1467 = vadd.f32 %v1466, %v1436
      %v1468 = vadd.f32 %v1467, %v1437
      %1469 = vadd.xlane.f32.xlu0 %v1468
      %v1470 = vpop.xlane.xlu0 %1469
      %v1471 = vrot.slane %v1470, 4
      %v1472 = vadd.f32 %v1470, %v1471
      %v1473 = vrot.slane %v1472, 2
      %v1474 = vadd.f32 %v1472, %v1473
      %v1475 = vrot.slane %v1474, 1
      %v1476 = vadd.f32 %v1474, %v1475
      %s1477 = vtos %v1476
      %v1478 = vstv %s1477
      %1479 = vst [vmem:[%s220] sm:$0x1] %v1478
      %p1480 = scmp.lt.s32.totalorder %s15, 1
      %s1481 = scalar_select %p1480, %s15, 1
      %s1482 = scalar_lea.vmem %s4, %s1481
      // Predicated region
      $region37: #{simple_mse_loss.1} parent=35 // pred_check
        %p1483 = pneg %p127
      $region38: #{simple_mse_loss.1} parent=35 // pred_check_branch
        %1485 = sbr.rel (%p1483) target = $region40
      $region39: #{simple_mse_loss.1} parent=35 // pred_region
        _
      $region40: #{simple_mse_loss.1} parent=35 // pred_fallthru
        _
    $region36: #{simple_mse_loss.1} parent=5 // pred_fallthru
      _
    %p1486 = scmp.le.s32.totalorder 2, %s10
    // Predicated region
    $region41: #{simple_mse_loss.1} parent=5 // pred_check
      %p1487 = pneg %p1486
    $region42: #{simple_mse_loss.1} parent=5 // pred_check_branch
      %1489 = sbr.rel (%p1487) target = $region44
    $region43: #{simple_mse_loss.1} parent=5 // pred_region
      %s1490 = ssub.s32 %s10, 2
      // Predicated region
      $region45: #{simple_mse_loss.1} parent=43 // pred_check
        %p1491 = pneg %p133
      $region46: #{simple_mse_loss.1} parent=43 // pred_check_branch
        %1493 = sbr.rel (%p1491) target = $region48
      $region47: #{simple_mse_loss.1} parent=43 // pred_region
        %p1494 = scmp.lt.s32.totalorder %s16, 1
        %s1495 = scalar_select %p1494, %s16, 1
        %s1496 = scalar_lea.vmem %s4, %s1495
      $region48: #{simple_mse_loss.1} parent=43 // pred_fallthru
        _
    $region44: #{simple_mse_loss.1} parent=5 // pred_fallthru
      _
  $region6: #{simple_mse_loss.1} parent=0 // loop_footer
    %s14 = sadd.s32 1, %s10
  $region7: #{simple_mse_loss.1} parent=0 // loop_footer_branch
    %9 = sbr.rel target = $region3
  $region8: #{simple_mse_loss.1} parent=0 // loop_exit
    _

</llo_original>
